<compile_context>
chip_gen: v7x
topology: tpu7x:2x2x1
jax: 0.10.0
libtpu: 0.0.40
codegen_flags: <defaults>
</compile_context>

<pallas_src>
import functools

import jax
import jax.numpy as jnp
from jax import lax
from jax.experimental import pallas as pl
from jax.experimental.pallas import tpu as pltpu


def _spconv_direct_kernel(x_ref, w_ref, b_ref, o_ref, *, tap_offsets, L):
    # x_ref: (1, Cin, H*W)    flattened input slab for one batch element
    # w_ref: (kH*kW, Co, Cin) conv weight, one (Co, Cin) matrix per tap
    # b_ref: (Co, 1)          conv bias (broadcast over lanes)
    # o_ref: (1, Co, L)       L = H*W - max(tap_offsets); lane-dense output
    acc = jnp.zeros(o_ref.shape[1:], jnp.float32)
    for t, d in enumerate(tap_offsets):
        # Static lane-offset slice of the resident block: in-kernel im2col.
        xs = x_ref[0, :, pl.ds(d, L)]                      # (Cin, L)
        acc = acc + jnp.dot(w_ref[t], xs,
                            preferred_element_type=jnp.float32)
    o_ref[0] = (acc + b_ref[...]).astype(o_ref.dtype)


@functools.partial(jax.jit, static_argnames=("out_channels", "r", "kernel_size"))
def sp_conv_transpose2d(x, weight, bias, *, out_channels, r, kernel_size):
    """Forward pass of SPConvTranspose2d.

    x:      (B, Cin, H, W)                float32, NCHW (PyTorch convention)
    weight: (out_channels*r, Cin, kH, kW) PyTorch OIHW
    bias:   (out_channels*r,)
    returns (B, out_channels, H_out, W_out * r)
    """
    kH, kW = kernel_size
    B, Cin, H, W = x.shape
    Co = out_channels * r
    H_out = H - kH + 1
    W_out = W - kW + 1
    HW = H * W
    max_d = (kH - 1) * W + (kW - 1)
    L = HW - max_d                       # covers every valid output position
    tap_offsets = tuple(kh * W + kw for kh in range(kH) for kw in range(kW))

    x_flat = x.reshape(B, Cin, HW)                       # free contiguous merge
    # OIHW -> (kH, kW, Co, Cin) -> (kH*kW, Co, Cin); tap order matches offsets.
    w_taps = jnp.transpose(weight, (2, 3, 0, 1)).reshape(kH * kW, Co, Cin)
    b_col = bias.reshape(Co, 1)

    kernel = functools.partial(_spconv_direct_kernel,
                               tap_offsets=tap_offsets, L=L)

    out_flat = pl.pallas_call(
        kernel,
        out_shape=jax.ShapeDtypeStruct((B, Co, L), x.dtype),
        grid_spec=pltpu.PrefetchScalarGridSpec(
            num_scalar_prefetch=0,
            grid=(B,),
            in_specs=[
                pl.BlockSpec((1, Cin, HW), lambda b: (b, 0, 0)),
                pl.BlockSpec((kH * kW, Co, Cin), lambda b: (0, 0, 0)),
                pl.BlockSpec((Co, 1), lambda b: (0, 0)),
            ],
            out_specs=pl.BlockSpec((1, Co, L), lambda b: (b, 0, 0)),
        ),
        compiler_params=pltpu.CompilerParams(
            dimension_semantics=("parallel",)),
    )(x_flat, w_taps, b_col)

    # out_flat[b, co, h*W + w] == conv[b, co, h, w] for all valid (h, w).
    # Pad L -> H_out*W, fold into rows of W, crop the wrap-around columns,
    # then apply the sub-pixel shuffle.  XLA fuses all of this into one copy.
    conv = jnp.pad(out_flat, ((0, 0), (0, 0), (0, kW - 1)))
    conv = conv.reshape(B, Co, H_out, W)[:, :, :, :W_out]  # (B, Co, H_out, W_out)
    # final[b, oc, h, w*r + rr] = conv[b, rr*out_channels + oc, h, w]
    out = conv.reshape(B, r, out_channels, H_out, W_out)
    out = jnp.transpose(out, (0, 2, 3, 4, 1))              # (B, oc, H, W, r)
    return out.reshape(B, out_channels, H_out, W_out * r)


def _reference(x, weight, bias, out_channels, r):
    """Pure-JAX reference mirroring the PyTorch forward."""
    conv = lax.conv_general_dilated(
        x, weight, window_strides=(1, 1), padding="VALID",
        dimension_numbers=("NCHW", "OIHW", "NCHW"))
    conv = conv + bias.reshape(1, -1, 1, 1)
    B, C, H, W = conv.shape
    out = conv.reshape(B, r, C // r, H, W)
    out = jnp.transpose(out, (0, 2, 3, 4, 1))
    return out.reshape(B, C // r, H, -1)


if __name__ == "__main__":
    # Small shapes consistent with the module's typical use in DFNet:
    # in_channels=4, out_channels=4, kernel_size=(1,3), r=2, spatial 16x16.
    B, Cin, H, W = 2, 4, 16, 16
    out_channels, r = 4, 2
    kernel_size = (1, 3)
    kH, kW = kernel_size
    Co = out_channels * r

    key = jax.random.PRNGKey(0)
    kx, kw_key, kb_key = jax.random.split(key, 3)

    x = jax.random.normal(kx, (B, Cin, H, W), dtype=jnp.float32)

    # Deterministic Conv2d-style init: U(-1/sqrt(fan_in), 1/sqrt(fan_in)).
    fan_in = Cin * kH * kW
    bound = 1.0 / (fan_in ** 0.5)
    weight = jax.random.uniform(kw_key, (Co, Cin, kH, kW),
                                minval=-bound, maxval=bound, dtype=jnp.float32)
    bias = jax.random.uniform(kb_key, (Co,),
                              minval=-bound, maxval=bound, dtype=jnp.float32)

    out = sp_conv_transpose2d(x, weight, bias,
                              out_channels=out_channels, r=r,
                              kernel_size=kernel_size)
    out = jax.block_until_ready(out)

    ref = jax.block_until_ready(_reference(x, weight, bias, out_channels, r))
    assert out.shape == (B, out_channels, H - kH + 1, (W - kW + 1) * r), out.shape
    assert jnp.allclose(out, ref, atol=1e-5, rtol=1e-5), \
        float(jnp.max(jnp.abs(out - ref)))

    print("KERNEL_OK")
</pallas_src>

<mosaic_0001>
module attributes {stable_mosaic.version = 11 : i64} {
  func.func @_spconv_direct_kernel(%arg0: i32, %arg1: memref<1x4x256xf32, #tpu.memory_space<vmem>>, %arg2: memref<3x8x4xf32, #tpu.memory_space<vmem>>, %arg3: memref<8x1xf32, #tpu.memory_space<vmem>>, %arg4: memref<1x8x254xf32, #tpu.memory_space<vmem>>) attributes {dimension_semantics = [#tpu.dimension_semantics<parallel>], iteration_bounds = array<i64: 2>, scalar_prefetch = 0 : i64, scratch_operands = 0 : i64, tpu.core_type = #tpu.core_type<tc>, window_params = [{transform_indices = @transform_0, window_bounds = array<i64: 1, 4, 256>}, {pipeline_mode = #tpu.pipeline_mode<synchronous>, transform_indices = @transform_1, window_bounds = array<i64: 3, 8, 4>}, {pipeline_mode = #tpu.pipeline_mode<synchronous>, transform_indices = @transform_2, window_bounds = array<i64: 8, 1>}, {transform_indices = @transform_3, window_bounds = array<i64: 1, 8, 254>}]} {
    %cst = arith.constant 0.000000e+00 : f32
    %0 = vector.broadcast %cst : f32 to vector<8x254xf32>
    %c0 = arith.constant 0 : index
    %c0_0 = arith.constant 0 : index
    %c0_1 = arith.constant 0 : index
    %1 = vector.load %arg1[%c0, %c0_0, %c0_1] : memref<1x4x256xf32, #tpu.memory_space<vmem>>, vector<1x4x254xf32>
    %2 = vector.shape_cast %1 : vector<1x4x254xf32> to vector<4x254xf32>
    %c0_2 = arith.constant 0 : index
    %c0_3 = arith.constant 0 : index
    %c0_4 = arith.constant 0 : index
    %3 = vector.load %arg2[%c0_2, %c0_3, %c0_4] : memref<3x8x4xf32, #tpu.memory_space<vmem>>, vector<1x8x4xf32>
    %4 = vector.shape_cast %3 : vector<1x8x4xf32> to vector<8x4xf32>
    %cst_5 = arith.constant dense<0.000000e+00> : vector<8x254xf32>
    %5 = tpu.matmul %4, %2, %cst_5 {dimension_numbers = #tpu.dot_dimension_numbers<[1], [0], [0], [1], [0, 0, 1, 1], [], []>} : vector<8x4xf32>, vector<4x254xf32>, vector<8x254xf32> -> vector<8x254xf32>
    %6 = arith.addf %0, %5 : vector<8x254xf32>
    %c0_6 = arith.constant 0 : index
    %c0_7 = arith.constant 0 : index
    %c1 = arith.constant 1 : index
    %7 = vector.load %arg1[%c0_6, %c0_7, %c1] : memref<1x4x256xf32, #tpu.memory_space<vmem>>, vector<1x4x254xf32>
    %8 = vector.shape_cast %7 : vector<1x4x254xf32> to vector<4x254xf32>
    %c1_8 = arith.constant 1 : index
    %c0_9 = arith.constant 0 : index
    %c0_10 = arith.constant 0 : index
    %9 = vector.load %arg2[%c1_8, %c0_9, %c0_10] : memref<3x8x4xf32, #tpu.memory_space<vmem>>, vector<1x8x4xf32>
    %10 = vector.shape_cast %9 : vector<1x8x4xf32> to vector<8x4xf32>
    %cst_11 = arith.constant dense<0.000000e+00> : vector<8x254xf32>
    %11 = tpu.matmul %10, %8, %cst_11 {dimension_numbers = #tpu.dot_dimension_numbers<[1], [0], [0], [1], [0, 0, 1, 1], [], []>} : vector<8x4xf32>, vector<4x254xf32>, vector<8x254xf32> -> vector<8x254xf32>
    %12 = arith.addf %6, %11 : vector<8x254xf32>
    %c0_12 = arith.constant 0 : index
    %c0_13 = arith.constant 0 : index
    %c2 = arith.constant 2 : index
    %13 = vector.load %arg1[%c0_12, %c0_13, %c2] : memref<1x4x256xf32, #tpu.memory_space<vmem>>, vector<1x4x254xf32>
    %14 = vector.shape_cast %13 : vector<1x4x254xf32> to vector<4x254xf32>
    %c2_14 = arith.constant 2 : index
    %c0_15 = arith.constant 0 : index
    %c0_16 = arith.constant 0 : index
    %15 = vector.load %arg2[%c2_14, %c0_15, %c0_16] : memref<3x8x4xf32, #tpu.memory_space<vmem>>, vector<1x8x4xf32>
    %16 = vector.shape_cast %15 : vector<1x8x4xf32> to vector<8x4xf32>
    %cst_17 = arith.constant dense<0.000000e+00> : vector<8x254xf32>
    %17 = tpu.matmul %16, %14, %cst_17 {dimension_numbers = #tpu.dot_dimension_numbers<[1], [0], [0], [1], [0, 0, 1, 1], [], []>} : vector<8x4xf32>, vector<4x254xf32>, vector<8x254xf32> -> vector<8x254xf32>
    %18 = arith.addf %12, %17 : vector<8x254xf32>
    %c0_18 = arith.constant 0 : index
    %c0_19 = arith.constant 0 : index
    %19 = vector.load %arg3[%c0_18, %c0_19] : memref<8x1xf32, #tpu.memory_space<vmem>>, vector<8x1xf32>
    %20 = vector.broadcast %19 : vector<8x1xf32> to vector<8x254xf32>
    %21 = arith.addf %18, %20 : vector<8x254xf32>
    %c0_20 = arith.constant 0 : index
    %c0_21 = arith.constant 0 : index
    %c0_22 = arith.constant 0 : index
    %22 = vector.load %arg4[%c0_20, %c0_21, %c0_22] : memref<1x8x254xf32, #tpu.memory_space<vmem>>, vector<1x8x254xf32>
    %23 = vector.shape_cast %22 : vector<1x8x254xf32> to vector<8x254xf32>
    %24 = vector.shape_cast %21 : vector<8x254xf32> to vector<1x8x254xf32>
    tpu.vector_store %arg4[%c0_20, %c0_21, %c0_22], %24 {strides = array<i32>} : memref<1x8x254xf32, #tpu.memory_space<vmem>>, vector<1x8x254xf32>,
    return
  }
  func.func @transform_0(%arg0: i32) -> (i32, i32, i32) {
    %c0_i32 = arith.constant 0 : i32
    %c0_i32_0 = arith.constant 0 : i32
    %c0_i32_1 = arith.constant 0 : i32
    return %arg0, %c0_i32, %c0_i32_0 : i32, i32, i32
  }
  func.func @transform_1(%arg0: i32) -> (i32, i32, i32) {
    %c0_i32 = arith.constant 0 : i32
    %c0_i32_0 = arith.constant 0 : i32
    %c0_i32_1 = arith.constant 0 : i32
    %c0_i32_2 = arith.constant 0 : i32
    return %c0_i32, %c0_i32_0, %c0_i32_1 : i32, i32, i32
  }
  func.func @transform_2(%arg0: i32) -> (i32, i32) {
    %c0_i32 = arith.constant 0 : i32
    %c0_i32_0 = arith.constant 0 : i32
    %c0_i32_1 = arith.constant 0 : i32
    return %c0_i32, %c0_i32_0 : i32, i32
  }
  func.func @transform_3(%arg0: i32) -> (i32, i32, i32) {
    %c0_i32 = arith.constant 0 : i32
    %c0_i32_0 = arith.constant 0 : i32
    %c0_i32_1 = arith.constant 0 : i32
    return %arg0, %c0_i32, %c0_i32_0 : i32, i32, i32
  }
}

</mosaic_0001>

<llo_original>
// kernel: sp_conv_transpose2d.1
$region0: #{sp_conv_transpose2d.1}
  #allocation0 [shape = 'u32[]', space=smem, size = 0x4, offset = 0x4, fixed_abs, tag = 'smem constant byte address 0x4 - core index']
  #allocation1 [shape = 'u32[144,128]{1,0:T(1,128)}', space=vmem, size = 0x12000, scoped, tag = 'internal scratch']
  %s0 = inlined_call_operand.vmem [shape: f32[2,4,256], index: 0, kind: input, shape index: {}]
  %s1 = inlined_call_operand.vmem [shape: f32[3,8,4], index: 1, kind: input, shape index: {}]
  %s2 = inlined_call_operand.vmem [shape: f32[8,1], index: 2, kind: input, shape index: {}]
  %s3 = inlined_call_operand.vmem [shape: f32[2,8,254], index: 3, kind: output, shape index: {}]
  %s4 = sld [smem:[#allocation0]]
  $region45: #{sp_conv_transpose2d.1} parent=0
    _
  %s6 = ssub.s32 1, %s4
  %s7 = scalar_select 0, %s6, %s4
  loop: start=0, step=1, limit=4
  $region2: #{sp_conv_transpose2d.1} parent=0 // loop_pre_header
    _
  $region3: #{sp_conv_transpose2d.1} parent=0 // loop_header
    %s9 = sphi 0, %s13
    %p10 = scmp.ge.s32.totalorder %s9, 4
    %s19 = sphi 0, %s21
    %s22 = sphi 0, %s19
    %s23 = sphi 0, %s22
    %s39 = sphi 0, %s23
    %s43 = sphi 0, %s43
    %s45 = sphi 0, %s43
    %s46 = sphi 0, %s45
    %s60 = sphi 0, %s46
    %s64 = sphi 0, %s64
    %s66 = sphi 0, %s64
    %s67 = sphi 0, %s66
    %s81 = sphi 0, %s67
    %s87 = sphi 0, %s89
    %s90 = sphi 0, %s87
    %s91 = sphi 0, %s90
    %s107 = sphi 0, %s91
  $region4: #{sp_conv_transpose2d.1} parent=0 // loop_header_branch
    %12 = sbr.rel (%p10) target = $region8
  $region5: #{sp_conv_transpose2d.1} parent=0 // loop_body
    %s14 = ssub.s32 %s9, 1
    %s15 = ssub.s32 %s9, 2
    %s16 = sadd.s32 %s9, 1
    %s17 = ssub.s32 %s9, %s16
    %p18 = scmp.eq.s32.totalorder %s17, 0
    %s20 = sadd.s32 %s19, 1
    %s21 = scalar_select %p18, %s19, %s20
    %p24 = pneg %p18
    %p25 = scmp.eq.s32.totalorder %s9, 1
    %p26 = por %p24, %p25
    %p27 = scmp.ne.s32.totalorder %s19, %s22
    %p28 = scmp.eq.s32.totalorder %s9, 0
    %p29 = por %p27, %p28
    %p30 = scmp.ne.s32.totalorder %s19, %s22
    %p31 = scmp.eq.s32.totalorder %s14, 1
    %p32 = por %p30, %p31
    %p33 = scmp.ne.s32.totalorder %s22, %s23
    %p34 = scmp.eq.s32.totalorder %s14, 0
    %p35 = por %p33, %p34
    %p36 = scmp.ne.s32.totalorder %s22, %s23
    %p37 = scmp.eq.s32.totalorder %s15, 1
    %p38 = por %p36, %p37
    %p40 = scmp.ne.s32.totalorder %s23, %s39
    %p41 = scmp.eq.s32.totalorder %s15, 0
    %p42 = por %p40, %p41
    %s44 = sadd.s32 %s43, 1
    %p47 = scmp.eq.s32.totalorder %s9, 1
    %p48 = scmp.ne.s32.totalorder %s43, %s45
    %p49 = scmp.eq.s32.totalorder %s9, 0
    %p50 = por %p48, %p49
    %p51 = scmp.ne.s32.totalorder %s43, %s45
    %p52 = scmp.eq.s32.totalorder %s14, 1
    %p53 = por %p51, %p52
    %p54 = scmp.ne.s32.totalorder %s45, %s46
    %p55 = scmp.eq.s32.totalorder %s14, 0
    %p56 = por %p54, %p55
    %p57 = scmp.ne.s32.totalorder %s45, %s46
    %p58 = scmp.eq.s32.totalorder %s15, 1
    %p59 = por %p57, %p58
    %p61 = scmp.ne.s32.totalorder %s46, %s60
    %p62 = scmp.eq.s32.totalorder %s15, 0
    %p63 = por %p61, %p62
    %s65 = sadd.s32 %s64, 1
    %p68 = scmp.eq.s32.totalorder %s9, 1
    %p69 = scmp.ne.s32.totalorder %s64, %s66
    %p70 = scmp.eq.s32.totalorder %s9, 0
    %p71 = por %p69, %p70
    %p72 = scmp.ne.s32.totalorder %s64, %s66
    %p73 = scmp.eq.s32.totalorder %s14, 1
    %p74 = por %p72, %p73
    %p75 = scmp.ne.s32.totalorder %s66, %s67
    %p76 = scmp.eq.s32.totalorder %s14, 0
    %p77 = por %p75, %p76
    %p78 = scmp.ne.s32.totalorder %s66, %s67
    %p79 = scmp.eq.s32.totalorder %s15, 1
    %p80 = por %p78, %p79
    %p82 = scmp.ne.s32.totalorder %s67, %s81
    %p83 = scmp.eq.s32.totalorder %s15, 0
    %p84 = por %p82, %p83
    %s85 = ssub.s32 %s9, %s16
    %p86 = scmp.eq.s32.totalorder %s85, 0
    %s88 = sadd.s32 %s87, 1
    %s89 = scalar_select %p86, %s87, %s88
    %p92 = pneg %p86
    %p93 = scmp.eq.s32.totalorder %s9, 1
    %p94 = por %p92, %p93
    %p95 = scmp.ne.s32.totalorder %s87, %s90
    %p96 = scmp.eq.s32.totalorder %s9, 0
    %p97 = por %p95, %p96
    %p98 = scmp.ne.s32.totalorder %s87, %s90
    %p99 = scmp.eq.s32.totalorder %s14, 1
    %p100 = por %p98, %p99
    %p101 = scmp.ne.s32.totalorder %s90, %s91
    %p102 = scmp.eq.s32.totalorder %s14, 0
    %p103 = por %p101, %p102
    %p104 = scmp.ne.s32.totalorder %s90, %s91
    %p105 = scmp.eq.s32.totalorder %s15, 1
    %p106 = por %p104, %p105
    %p108 = scmp.ne.s32.totalorder %s91, %s107
    %p109 = scmp.eq.s32.totalorder %s15, 0
    %p110 = por %p108, %p109
    %p111 = scmp.le.s32.totalorder 1, %s9
    %p112 = scmp.lt.s32.totalorder %s9, 3
    %p113 = pnand %p111, %p112
    %p114 = pneg %p113
    // Predicated region
    $region9: #{sp_conv_transpose2d.1} parent=5 // pred_check
      _
    $region10: #{sp_conv_transpose2d.1} parent=5 // pred_check_branch
      %116 = sbr.rel (%p113) target = $region12
    $region11: #{sp_conv_transpose2d.1} parent=5 // pred_region
      %s117 = ssub.s32 %s9, 1
      // Predicated region
      $region13: #{sp_conv_transpose2d.1} parent=11 // pred_check
        %p118 = pneg %p56
      $region14: #{sp_conv_transpose2d.1} parent=11 // pred_check_branch
        %120 = sbr.rel (%p118) target = $region16
      $region15: #{sp_conv_transpose2d.1} parent=11 // pred_region
        _
      $region16: #{sp_conv_transpose2d.1} parent=11 // pred_fallthru
        _
      // Predicated region
      $region17: #{sp_conv_transpose2d.1} parent=11 // pred_check
        %p121 = pneg %p77
      $region18: #{sp_conv_transpose2d.1} parent=11 // pred_check_branch
        %123 = sbr.rel (%p121) target = $region20
      $region19: #{sp_conv_transpose2d.1} parent=11 // pred_region
        _
      $region20: #{sp_conv_transpose2d.1} parent=11 // pred_fallthru
        _
    $region12: #{sp_conv_transpose2d.1} parent=5 // pred_fallthru
      _
    %p124 = scmp.lt.s32.totalorder %s9, 2
    // Predicated region
    $region21: #{sp_conv_transpose2d.1} parent=5 // pred_check
      %p125 = pneg %p124
    $region22: #{sp_conv_transpose2d.1} parent=5 // pred_check_branch
      %127 = sbr.rel (%p125) target = $region24
    $region23: #{sp_conv_transpose2d.1} parent=5 // pred_region
      // Predicated region
      $region25: #{sp_conv_transpose2d.1} parent=23 // pred_check
        %p128 = pneg %p29
      $region26: #{sp_conv_transpose2d.1} parent=23 // pred_check_branch
        %130 = sbr.rel (%p128) target = $region28
      $region27: #{sp_conv_transpose2d.1} parent=23 // pred_region
        %p131 = scmp.lt.s32.totalorder %s9, 1
        %s132 = scalar_select %p131, %s9, 1
        %s133 = smul.addr %s132, 2
        %s134 = smul.addr %s133, 4
        %s135 = scalar_lea.vmem %s0, %s134
      $region28: #{sp_conv_transpose2d.1} parent=23 // pred_fallthru
        _
    $region24: #{sp_conv_transpose2d.1} parent=5 // pred_fallthru
      _
    %p136 = scmp.le.s32.totalorder 1, %s9
    %p137 = scmp.lt.s32.totalorder %s9, 3
    %p138 = pnand %p136, %p137
    %p139 = pneg %p138
    // Predicated region
    $region29: #{sp_conv_transpose2d.1} parent=5 // pred_check
      _
    $region30: #{sp_conv_transpose2d.1} parent=5 // pred_check_branch
      %141 = sbr.rel (%p138) target = $region32
    $region31: #{sp_conv_transpose2d.1} parent=5 // pred_region
      %s142 = ssub.s32 %s9, 1
      %p143 = scmp.lt.s32.totalorder %s14, 1
      %s144 = scalar_select %p143, %s14, 1
      %s145 = smul.addr %s144, 2
      %s146 = smul.addr %s145, 4
      %s147 = scalar_lea.vmem %s0, %s146
      %p148 = pneg %p35
      %p149 = pneg %p32
      %p150 = pneg %p56
      %p151 = pneg %p53
      %p152 = pneg %p77
      %p153 = pneg %p74
      %p154 = pneg %p103
      %p155 = pneg %p100
      %p156 = scmp.lt.s32.totalorder %s14, 1
      %s157 = scalar_select %p156, %s14, 1
      %s158 = smul.addr %s157, 2
      %s159 = smul.addr %s158, 8
      %s160 = scalar_lea.vmem %s3, %s159
      %p161 = scmp.lt.s32.totalorder %s14, 1
      %s162 = scalar_select %p161, %s14, 1
      %s163 = smul.addr %s162, 2
      %s164 = smul.addr %s163, 4
      %s165 = scalar_lea.vmem %s0, %s164
      %p166 = scmp.lt.s32.totalorder %s14, 1
      %s167 = scalar_select %p166, %s14, 1
      %s168 = smul.addr %s167, 2
      %s169 = smul.addr %s168, 8
      %s170 = scalar_lea.vmem %s3, %s169
      %v171 = vld [vmem:[%s165] sm:$0xff]
      %v172 = vld [vmem:[%s1] sm:$0xff]
      %s173 = scalar_lea.vmem %s1, 8
      %v174 = vld [vmem:[%s173] sm:$0xff]
      %v176 = vcombine.high %v171, %v171
      %177 = vrot.lane.b32.xlu0 %v171, 127
      %v178 = vpop.permute.xlu0 %177
      %179 = vrot.lane.b32.xlu0 %v176, 127
      %v180 = vpop.permute.xlu0 %179
      %vm181 = vcmask 1039360
      %v182 = vsel %vm181, %v178, %v180
      %vm183 = vcmask 31744
      %v185 = vsel %vm183, %v174, 0
      %vm187 = vcmask 1043456
      %v188 = vsel %vm187, %v182, 0
      %v190 = vsel %vm187, %v180, 0
      %192 = vmatprep.subr.mxu0 %v190
      %193 = vmatpush1.msra.mxu0 %v188
      %194 = vmatprep.subr.mxu0 0.0
      %195 = vmatpush1.msra.mxu0 0.0
      %196 = vmatprep.subr.mxu0 0.0
      %197 = vmatpush1.msra.mxu0 0.0
      %198 = vmatprep.subr.mxu0 0.0
      %199 = vmatpush1.msra.mxu0 0.0
      %200 = vmatprep.subr.mxu0 0.0
      %201 = vmatpush1.msra.mxu0 0.0
      %202 = vmatprep.subr.mxu0 0.0
      %203 = vmatpush1.msra.mxu0 0.0
      %204 = vmatprep.subr.mxu0 0.0
      %205 = vmatpush1.msra.mxu0 0.0
      %206 = vmatprep.subr.mxu0 0.0
      %207 = vmatpush1.msra.mxu0 0.0
      %208 = vmatprep.subr.mxu0 0.0
      %209 = vmatpush1.msra.mxu0 0.0
      %210 = vmatprep.subr.mxu0 0.0
      %211 = vmatpush1.msra.mxu0 0.0
      %212 = vmatprep.subr.mxu0 0.0
      %213 = vmatpush1.msra.mxu0 0.0
      %214 = vmatprep.subr.mxu0 0.0
      %215 = vmatpush1.msra.mxu0 0.0
      %216 = vmatprep.subr.mxu0 0.0
      %217 = vmatpush1.msra.mxu0 0.0
      %218 = vmatprep.subr.mxu0 0.0
      %219 = vmatpush1.msra.mxu0 0.0
      %220 = vmatprep.subr.mxu0 0.0
      %221 = vmatpush1.msra.mxu0 0.0
      %222 = vmatprep.subr.mxu0 0.0
      %223 = vmatpush1.msra.mxu0 0.0
      %224 = vmatprep.subr.mxu0 0.0
      %225 = vmatpush1.msra.mxu0 0.0
      %226 = vmatprep.subr.mxu0 0.0
      %227 = vmatpush1.msra.mxu0 0.0
      %228 = vmatprep.subr.mxu0 0.0
      %229 = vmatpush1.msra.mxu0 0.0
      %230 = vmatprep.subr.mxu0 0.0
      %231 = vmatpush1.msra.mxu0 0.0
      %232 = vmatprep.subr.mxu0 0.0
      %233 = vmatpush1.msra.mxu0 0.0
      %234 = vmatprep.subr.mxu0 0.0
      %235 = vmatpush1.msra.mxu0 0.0
      %236 = vmatprep.subr.mxu0 0.0
      %237 = vmatpush1.msra.mxu0 0.0
      %238 = vmatprep.subr.mxu0 0.0
      %239 = vmatpush1.msra.mxu0 0.0
      %240 = vmatprep.subr.mxu0 0.0
      %241 = vmatpush1.msra.mxu0 0.0
      %242 = vmatprep.subr.mxu0 0.0
      %243 = vmatpush1.msra.mxu0 0.0
      %244 = vmatprep.subr.mxu0 0.0
      %245 = vmatpush1.msra.mxu0 0.0
      %246 = vmatprep.subr.mxu0 0.0
      %247 = vmatpush1.msra.mxu0 0.0
      %248 = vmatprep.subr.mxu0 0.0
      %249 = vmatpush1.msra.mxu0 0.0
      %250 = vmatprep.subr.mxu0 0.0
      %251 = vmatpush1.msra.mxu0 0.0
      %252 = vmatprep.subr.mxu0 0.0
      %253 = vmatpush1.msra.mxu0 0.0
      %254 = vmatprep.subr.mxu0 0.0
      %255 = vmatpush1.msra.mxu0 0.0
      %256 = vmatprep.mubr.f32.mxu0 0.0
      %257 = vmatmul.mubr.f32.gmra.mrb[0].mxu0 %v185
      %v258 = vpop.f32.mrb[0].mxu0
      %v259 = vadd.f32 0.0, %v258
      %v260 = vpop.f32.mrb[0].mxu0
      %v261 = vadd.f32 0.0, %v260
      %262 = vdwg.mxu0
      %v264 = vsel %vm183, %v172, 0
      %v266 = vsel %vm187, %v171, 0
      %v268 = vsel %vm187, %v176, 0
      %270 = vmatprep.subr.mxu0 %v268
      %271 = vmatpush1.msra.mxu0 %v266
      %272 = vmatprep.subr.mxu0 0.0
      %273 = vmatpush1.msra.mxu0 0.0
      %274 = vmatprep.subr.mxu0 0.0
      %275 = vmatpush1.msra.mxu0 0.0
      %276 = vmatprep.subr.mxu0 0.0
      %277 = vmatpush1.msra.mxu0 0.0
      %278 = vmatprep.subr.mxu0 0.0
      %279 = vmatpush1.msra.mxu0 0.0
      %280 = vmatprep.subr.mxu0 0.0
      %281 = vmatpush1.msra.mxu0 0.0
      %282 = vmatprep.subr.mxu0 0.0
      %283 = vmatpush1.msra.mxu0 0.0
      %284 = vmatprep.subr.mxu0 0.0
      %285 = vmatpush1.msra.mxu0 0.0
      %286 = vmatprep.subr.mxu0 0.0
      %287 = vmatpush1.msra.mxu0 0.0
      %288 = vmatprep.subr.mxu0 0.0
      %289 = vmatpush1.msra.mxu0 0.0
      %290 = vmatprep.subr.mxu0 0.0
      %291 = vmatpush1.msra.mxu0 0.0
      %292 = vmatprep.subr.mxu0 0.0
      %293 = vmatpush1.msra.mxu0 0.0
      %294 = vmatprep.subr.mxu0 0.0
      %295 = vmatpush1.msra.mxu0 0.0
      %296 = vmatprep.subr.mxu0 0.0
      %297 = vmatpush1.msra.mxu0 0.0
      %298 = vmatprep.subr.mxu0 0.0
      %299 = vmatpush1.msra.mxu0 0.0
      %300 = vmatprep.subr.mxu0 0.0
      %301 = vmatpush1.msra.mxu0 0.0
      %302 = vmatprep.subr.mxu0 0.0
      %303 = vmatpush1.msra.mxu0 0.0
      %304 = vmatprep.subr.mxu0 0.0
      %305 = vmatpush1.msra.mxu0 0.0
      %306 = vmatprep.subr.mxu0 0.0
      %307 = vmatpush1.msra.mxu0 0.0
      %308 = vmatprep.subr.mxu0 0.0
      %309 = vmatpush1.msra.mxu0 0.0
      %310 = vmatprep.subr.mxu0 0.0
      %311 = vmatpush1.msra.mxu0 0.0
      %312 = vmatprep.subr.mxu0 0.0
      %313 = vmatpush1.msra.mxu0 0.0
      %314 = vmatprep.subr.mxu0 0.0
      %315 = vmatpush1.msra.mxu0 0.0
      %316 = vmatprep.subr.mxu0 0.0
      %317 = vmatpush1.msra.mxu0 0.0
      %318 = vmatprep.subr.mxu0 0.0
      %319 = vmatpush1.msra.mxu0 0.0
      %320 = vmatprep.subr.mxu0 0.0
      %321 = vmatpush1.msra.mxu0 0.0
      %322 = vmatprep.subr.mxu0 0.0
      %323 = vmatpush1.msra.mxu0 0.0
      %324 = vmatprep.subr.mxu0 0.0
      %325 = vmatpush1.msra.mxu0 0.0
      %326 = vmatprep.subr.mxu0 0.0
      %327 = vmatpush1.msra.mxu0 0.0
      %328 = vmatprep.subr.mxu0 0.0
      %329 = vmatpush1.msra.mxu0 0.0
      %330 = vmatprep.subr.mxu0 0.0
      %331 = vmatpush1.msra.mxu0 0.0
      %332 = vmatprep.subr.mxu0 0.0
      %333 = vmatpush1.msra.mxu0 0.0
      %334 = vmatprep.mubr.f32.mxu0 0.0
      %335 = vmatmul.mubr.f32.gmra.mrb[0].mxu0 %v264
      %v336 = vpop.f32.mrb[0].mxu0
      %v337 = vadd.f32 %v259, %v336
      %v338 = vpop.f32.mrb[0].mxu0
      %v339 = vadd.f32 %v261, %v338
      %340 = vdwg.mxu0
      %v341 = vld [vmem:[%s165] sm:$0xff]
      %s342 = scalar_lea.vmem %s1, 16
      %v343 = vld [vmem:[%s342] sm:$0xff]
      %v345 = vcombine.high %v341, %v341
      %346 = vrot.lane.b32.xlu0 %v341, 126
      %v347 = vpop.permute.xlu0 %346
      %348 = vrot.lane.b32.xlu0 %v345, 126
      %v349 = vpop.permute.xlu0 %348
      %vm350 = vcmask 1031168
      %v351 = vsel %vm350, %v347, %v349
      %v353 = vsel %vm183, %v343, 0
      %v355 = vsel %vm187, %v351, 0
      %v357 = vsel %vm187, %v349, 0
      %359 = vmatprep.subr.mxu0 %v357
      %360 = vmatpush1.msra.mxu0 %v355
      %361 = vmatprep.subr.mxu0 0.0
      %362 = vmatpush1.msra.mxu0 0.0
      %363 = vmatprep.subr.mxu0 0.0
      %364 = vmatpush1.msra.mxu0 0.0
      %365 = vmatprep.subr.mxu0 0.0
      %366 = vmatpush1.msra.mxu0 0.0
      %367 = vmatprep.subr.mxu0 0.0
      %368 = vmatpush1.msra.mxu0 0.0
      %369 = vmatprep.subr.mxu0 0.0
      %370 = vmatpush1.msra.mxu0 0.0
      %371 = vmatprep.subr.mxu0 0.0
      %372 = vmatpush1.msra.mxu0 0.0
      %373 = vmatprep.subr.mxu0 0.0
      %374 = vmatpush1.msra.mxu0 0.0
      %375 = vmatprep.subr.mxu0 0.0
      %376 = vmatpush1.msra.mxu0 0.0
      %377 = vmatprep.subr.mxu0 0.0
      %378 = vmatpush1.msra.mxu0 0.0
      %379 = vmatprep.subr.mxu0 0.0
      %380 = vmatpush1.msra.mxu0 0.0
      %381 = vmatprep.subr.mxu0 0.0
      %382 = vmatpush1.msra.mxu0 0.0
      %383 = vmatprep.subr.mxu0 0.0
      %384 = vmatpush1.msra.mxu0 0.0
      %385 = vmatprep.subr.mxu0 0.0
      %386 = vmatpush1.msra.mxu0 0.0
      %387 = vmatprep.subr.mxu0 0.0
      %388 = vmatpush1.msra.mxu0 0.0
      %389 = vmatprep.subr.mxu0 0.0
      %390 = vmatpush1.msra.mxu0 0.0
      %391 = vmatprep.subr.mxu0 0.0
      %392 = vmatpush1.msra.mxu0 0.0
      %393 = vmatprep.subr.mxu0 0.0
      %394 = vmatpush1.msra.mxu0 0.0
      %395 = vmatprep.subr.mxu0 0.0
      %396 = vmatpush1.msra.mxu0 0.0
      %397 = vmatprep.subr.mxu0 0.0
      %398 = vmatpush1.msra.mxu0 0.0
      %399 = vmatprep.subr.mxu0 0.0
      %400 = vmatpush1.msra.mxu0 0.0
      %401 = vmatprep.subr.mxu0 0.0
      %402 = vmatpush1.msra.mxu0 0.0
      %403 = vmatprep.subr.mxu0 0.0
      %404 = vmatpush1.msra.mxu0 0.0
      %405 = vmatprep.subr.mxu0 0.0
      %406 = vmatpush1.msra.mxu0 0.0
      %407 = vmatprep.subr.mxu0 0.0
      %408 = vmatpush1.msra.mxu0 0.0
      %409 = vmatprep.subr.mxu0 0.0
      %410 = vmatpush1.msra.mxu0 0.0
      %411 = vmatprep.subr.mxu0 0.0
      %412 = vmatpush1.msra.mxu0 0.0
      %413 = vmatprep.subr.mxu0 0.0
      %414 = vmatpush1.msra.mxu0 0.0
      %415 = vmatprep.subr.mxu0 0.0
      %416 = vmatpush1.msra.mxu0 0.0
      %417 = vmatprep.subr.mxu0 0.0
      %418 = vmatpush1.msra.mxu0 0.0
      %419 = vmatprep.subr.mxu0 0.0
      %420 = vmatpush1.msra.mxu0 0.0
      %421 = vmatprep.subr.mxu0 0.0
      %422 = vmatpush1.msra.mxu0 0.0
      %423 = vmatprep.mubr.f32.mxu0 0.0
      %424 = vmatmul.mubr.f32.gmra.mrb[0].mxu0 %v353
      %v425 = vpop.f32.mrb[0].mxu0
      %v426 = vadd.f32 0.0, %v425
      %v427 = vpop.f32.mrb[0].mxu0
      %v428 = vadd.f32 0.0, %v427
      %429 = vdwg.mxu0
      %v430 = vadd.f32 %v337, %v426
      %v431 = vadd.f32 %v339, %v428
      %v432 = vld [vmem:[%s2] sm:$0xff]
      %434 = vset.pattern.permute.xlu0 0
      %435 = vperm.xlu0 %434, %v432
      %v436 = vpop.permute.xlu0 %435
      %v438 = vadd.f32 %v430, %v436
      %v439 = vadd.f32 %v431, %v436
      %440 = vst [vmem:[%s170] sm:$0xff] %v438
      %441 = vst.msk [vmem:[%s170 + $0x8] sm:$0xff] %vm350, %v439
      %p442 = scmp.lt.s32.totalorder %s14, 1
      %s443 = scalar_select %p442, %s14, 1
      %s444 = smul.addr %s443, 2
      %s445 = smul.addr %s444, 8
      %s446 = scalar_lea.vmem %s3, %s445
      // Predicated region
      $region33: #{sp_conv_transpose2d.1} parent=31 // pred_check
        %p447 = pneg %p100
      $region34: #{sp_conv_transpose2d.1} parent=31 // pred_check_branch
        %449 = sbr.rel (%p447) target = $region36
      $region35: #{sp_conv_transpose2d.1} parent=31 // pred_region
        _
      $region36: #{sp_conv_transpose2d.1} parent=31 // pred_fallthru
        _
    $region32: #{sp_conv_transpose2d.1} parent=5 // pred_fallthru
      _
    %p450 = scmp.le.s32.totalorder 2, %s9
    // Predicated region
    $region37: #{sp_conv_transpose2d.1} parent=5 // pred_check
      %p451 = pneg %p450
    $region38: #{sp_conv_transpose2d.1} parent=5 // pred_check_branch
      %453 = sbr.rel (%p451) target = $region40
    $region39: #{sp_conv_transpose2d.1} parent=5 // pred_region
      %s454 = ssub.s32 %s9, 2
      // Predicated region
      $region41: #{sp_conv_transpose2d.1} parent=39 // pred_check
        %p455 = pneg %p106
      $region42: #{sp_conv_transpose2d.1} parent=39 // pred_check_branch
        %457 = sbr.rel (%p455) target = $region44
      $region43: #{sp_conv_transpose2d.1} parent=39 // pred_region
        %p458 = scmp.lt.s32.totalorder %s15, 1
        %s459 = scalar_select %p458, %s15, 1
        %s460 = smul.addr %s459, 2
        %s461 = smul.addr %s460, 8
        %s462 = scalar_lea.vmem %s3, %s461
      $region44: #{sp_conv_transpose2d.1} parent=39 // pred_fallthru
        _
    $region40: #{sp_conv_transpose2d.1} parent=5 // pred_fallthru
      _
  $region6: #{sp_conv_transpose2d.1} parent=0 // loop_footer
    %s13 = sadd.s32 1, %s9
  $region7: #{sp_conv_transpose2d.1} parent=0 // loop_footer_branch
    %8 = sbr.rel target = $region3
  $region8: #{sp_conv_transpose2d.1} parent=0 // loop_exit
    _

</llo_original>
